<compile_context>
chip_gen: v6e
topology: v6e:2x2x1
jax: 0.10.0
libtpu: 0.0.40
codegen_flags: <defaults>
</compile_context>

<pallas_src>
import functools

import jax
import jax.numpy as jnp
from jax.experimental import pallas as pl
from jax.experimental.pallas import tpu as pltpu


def _eps_infonce_kernel(z_row_ref, z_col_ref, z_pos_ref, loss_ref, denom_acc,
                        *, eps_over_t, tm, tk, acc_w):
    i = pl.program_id(0)
    k = pl.program_id(1)

    @pl.when(k == 0)
    def _init():
        denom_acc[...] = jnp.zeros_like(denom_acc)

    # Similarity tile, already divided by temperature (row operand pre-scaled).
    # Contract the last dims of both operands (A @ B.T on the MXU, no transpose).
    sim_t = jax.lax.dot_general(
        z_row_ref[...], z_col_ref[...],
        dimension_numbers=(((1,), (1,)), ((), ())),
        preferred_element_type=jnp.float32)                 # (tm, tk) f32

    e = jnp.exp(sim_t)                                      # EUP

    def _lane_sum(x):                                       # (tm, tk) -> (tm, acc_w)
        if acc_w == 1:
            return jnp.sum(x, axis=1, keepdims=True)
        out = x[:, 0:128]
        for g in range(1, tk // 128):                       # static, lane-aligned slices
            out = out + x[:, g * 128:(g + 1) * 128]
        return out

    denom_acc[...] += _lane_sum(e)

    # Remove the self-similarity contribution only on block-diagonal tiles.
    row_lo = i * tm
    col_lo = k * tk

    @pl.when(jnp.logical_and(row_lo < col_lo + tk, col_lo < row_lo + tm))
    def _subtract_diag():
        row_g = row_lo + jax.lax.broadcasted_iota(jnp.int32, (tm, tk), 0)
        col_g = col_lo + jax.lax.broadcasted_iota(jnp.int32, (tm, tk), 1)
        diag = jnp.where(row_g == col_g, e, 0.0)
        denom_acc[...] -= _lane_sum(diag)

    # Finalize on the last reduction step for this row tile.
    @pl.when(k == pl.num_programs(1) - 1)
    def _finalize():
        den = jnp.sum(denom_acc[...], axis=1, keepdims=True)      # (tm, 1)
        zr = z_row_ref[...].astype(jnp.float32)                   # pre-scaled by 1/t
        zp = z_pos_ref[...].astype(jnp.float32)                   # normalized, unscaled
        pos_t = jnp.sum(zr * zp, axis=1, keepdims=True)           # = positives / t
        # -log(exp(p/t) / (exp((p-eps)/t) + den)) == -p/t + log(exp(p/t - eps/t) + den)
        loss_ref[...] = -pos_t + jnp.log(jnp.exp(pos_t - eps_over_t) + den)


def eps_infonce(z_i, z_j, temperature: float = 1.0, epsilon: float = 0.0,
                matmul_dtype=jnp.bfloat16):
    """EpsInfoNCE / NT-Xent loss (forward only).

    matmul_dtype=jnp.bfloat16 (default) runs the (M,M,D) similarity matmul at
    full MXU rate; similarities change by ~1e-3 vs the f32 reference.  Pass
    matmul_dtype=jnp.float32 for ~1e-5 agreement.
    """
    n, d = z_i.shape
    assert z_j.shape == (n, d)
    m = 2 * n
    inv_t = 1.0 / float(temperature)

    # --- normalize once (matches F.cosine_similarity, eps=1e-8), pre-scale rows ---
    z = jnp.concatenate([z_i, z_j], axis=0).astype(jnp.float32)       # (M, D)
    inv_norm = jax.lax.rsqrt(jnp.maximum(jnp.sum(z * z, axis=1, keepdims=True), 1e-16))
    zn = z * inv_norm
    z_cols = zn.astype(matmul_dtype)                # column stream + positive partners
    z_rows = (zn * inv_t).astype(matmul_dtype)      # row stream, pre-divided by temperature

    # --- VMEM budget (generation-aware) and tile selection ---
    try:
        vmem_cap = int(pltpu.get_tpu_info().vmem_capacity_bytes)
    except Exception:
        vmem_cap = 64 * 1024 * 1024
    # ~48 MiB scoped on v7x (64 MiB physical), ~96 MiB on v5e/v6e (128 MiB physical)
    vmem_limit = min(int(0.75 * vmem_cap), 100 * 1024 * 1024)

    itemsize = jnp.dtype(matmul_dtype).itemsize

    def _fits(a, b):
        stream = 2 * (2 * a + b) * d * itemsize     # double-buffered row/pos/col tiles
        inter = 3 * a * b * 4                       # sim / exp f32 intermediates headroom
        acc = a * 128 * 4 + 4 * a * 4               # accumulator + output blocks
        return stream + inter + acc <= vmem_limit - (2 << 20)

    cands = (512, 256, 128, 64, 32, 16, 8)
    tm_cands = [c for c in cands if c <= n and n % c == 0]   # tm divides N -> whole positive block
    tk_cands = [c for c in cands if c <= m and m % c == 0]
    if not tm_cands or not tk_cands:
        # TODO(synk): batch sizes not a multiple of 8 would need row padding +
        # denominator masking; not implemented.
        raise ValueError("EpsInfoNCE Pallas kernel requires batch_size % 8 == 0")
    tm = tk = None
    for a in tm_cands:                              # largest tiles that fit the budget
        for b in tk_cands:
            if _fits(a, b):
                tm, tk = a, b
                break
        if tm is not None:
            break
    if tm is None:
        tm, tk = tm_cands[-1], tk_cands[-1]

    n_row_tiles = m // tm
    half_off = n // tm
    acc_w = 128 if (tk % 128 == 0) else 1

    kernel = functools.partial(
        _eps_infonce_kernel,
        eps_over_t=float(epsilon) * inv_t, tm=tm, tk=tk, acc_w=acc_w)

    per_row = pl.pallas_call(
        kernel,
        out_shape=jax.ShapeDtypeStruct((m, 1), jnp.float32),
        grid_spec=pltpu.PrefetchScalarGridSpec(
            num_scalar_prefetch=0,
            grid=(m // tm, m // tk),
            in_specs=[
                # row tile (pre-scaled by 1/t); re-fetched only when i changes
                pl.BlockSpec((tm, d), lambda i, k: (i, 0)),
                # column tile (reduction axis)
                pl.BlockSpec((tk, d), lambda i, k: (k, 0)),
                # positive-partner row tile: rows shifted by N
                pl.BlockSpec((tm, d),
                             lambda i, k: ((i + half_off) % n_row_tiles, 0)),
            ],
            out_specs=pl.BlockSpec((tm, 1), lambda i, k: (i, 0)),
            scratch_shapes=[pltpu.VMEM((tm, acc_w), jnp.float32)],
        ),
        compiler_params=pltpu.CompilerParams(
            dimension_semantics=("parallel", "arbitrary"),
            vmem_limit_bytes=vmem_limit,
        ),
    )(z_rows, z_cols, z_cols)

    return jnp.sum(per_row) / m


def _reference(z_i, z_j, temperature=1.0, epsilon=0.0):
    # Pure-JAX reference mirroring the PyTorch forward exactly.
    n = z_i.shape[0]
    z = jnp.concatenate([z_i, z_j], axis=0).astype(jnp.float32)
    norms = jnp.maximum(jnp.linalg.norm(z, axis=1, keepdims=True), 1e-8)
    zn = z / norms
    sim = zn @ zn.T
    sim_ij = jnp.diagonal(sim, offset=n)
    sim_ji = jnp.diagonal(sim, offset=-n)
    positives = jnp.concatenate([sim_ij, sim_ji], axis=0)
    mask = (~jnp.eye(2 * n, dtype=bool)).astype(jnp.float32)
    numerator = jnp.exp(positives / temperature)
    numerator_eps = jnp.exp((positives - epsilon) / temperature)
    denominator = mask * jnp.exp(sim / temperature)
    all_losses = -jnp.log(numerator / (numerator_eps + jnp.sum(denominator, axis=1)))
    return jnp.sum(all_losses) / (2 * n)


if __name__ == "__main__":
    key = jax.random.PRNGKey(0)
    k1, k2 = jax.random.split(key)
    batch, hidden = 8, 32
    temperature, epsilon = 0.5, 0.1
    z_i = jax.random.normal(k1, (batch, hidden), dtype=jnp.float32)
    z_j = jax.random.normal(k2, (batch, hidden), dtype=jnp.float32)

    ref = _reference(z_i, z_j, temperature=temperature, epsilon=epsilon)

    # f32 path: matches the reference tightly.
    loss_f32 = eps_infonce(z_i, z_j, temperature=temperature, epsilon=epsilon,
                           matmul_dtype=jnp.float32)
    jax.block_until_ready(loss_f32)
    assert jnp.allclose(loss_f32, ref, rtol=1e-5, atol=1e-5), (loss_f32, ref)

    # default bf16 path: full-rate MXU, looser tolerance.
    loss_bf16 = eps_infonce(z_i, z_j, temperature=temperature, epsilon=epsilon)
    jax.block_until_ready(loss_bf16)
    assert jnp.allclose(loss_bf16, ref, rtol=5e-2, atol=5e-2), (loss_bf16, ref)

    print("KERNEL_OK")
</pallas_src>

<mosaic_0001>
module attributes {stable_mosaic.version = 11 : i64} {
  func.func @_eps_infonce_kernel(%arg0: i32, %arg1: i32, %arg2: memref<8x32xf32, #tpu.memory_space<vmem>>, %arg3: memref<16x32xf32, #tpu.memory_space<vmem>>, %arg4: memref<8x32xf32, #tpu.memory_space<vmem>>, %arg5: memref<8x1xf32, #tpu.memory_space<vmem>>, %arg6: memref<8x1xf32, #tpu.memory_space<vmem>>) attributes {dimension_semantics = [#tpu.dimension_semantics<parallel>, #tpu.dimension_semantics<arbitrary>], iteration_bounds = array<i64: 2, 1>, scalar_prefetch = 0 : i64, scratch_operands = 1 : i64, tpu.core_type = #tpu.core_type<tc>, window_params = [{transform_indices = @transform_0, window_bounds = array<i64: 8, 32>}, {transform_indices = @transform_1, window_bounds = array<i64: 16, 32>}, {transform_indices = @transform_2, window_bounds = array<i64: 8, 32>}, {transform_indices = @transform_3, window_bounds = array<i64: 8, 1>}]} {
    %c0_i32 = arith.constant 0 : i32
    %0 = arith.cmpi eq, %arg1, %c0_i32 : i32
    %1 = arith.extui %0 : i1 to i32
    %c0_i32_0 = arith.constant 0 : i32
    %2 = arith.cmpi ne, %1, %c0_i32_0 : i32
    scf.if %2 {
      %cst_14 = arith.constant 0.000000e+00 : f32
      %24 = vector.broadcast %cst_14 : f32 to vector<8x1xf32>
      %c0_15 = arith.constant 0 : index
      %c0_16 = arith.constant 0 : index
      %25 = vector.load %arg6[%c0_15, %c0_16] : memref<8x1xf32, #tpu.memory_space<vmem>>, vector<8x1xf32>
      tpu.vector_store %arg6[%c0_15, %c0_16], %24 {strides = array<i32>} : memref<8x1xf32, #tpu.memory_space<vmem>>, vector<8x1xf32>,
    } else {
    }
    %c0 = arith.constant 0 : index
    %c0_1 = arith.constant 0 : index
    %3 = vector.load %arg2[%c0, %c0_1] : memref<8x32xf32, #tpu.memory_space<vmem>>, vector<8x32xf32>
    %c0_2 = arith.constant 0 : index
    %c0_3 = arith.constant 0 : index
    %4 = vector.load %arg3[%c0_2, %c0_3] : memref<16x32xf32, #tpu.memory_space<vmem>>, vector<16x32xf32>
    %cst = arith.constant dense<0.000000e+00> : vector<8x16xf32>
    %5 = tpu.matmul %3, %4, %cst {dimension_numbers = #tpu.dot_dimension_numbers<[1], [1], [0], [0], [0, 0, 1, 0], [], []>} : vector<8x32xf32>, vector<16x32xf32>, vector<8x16xf32> -> vector<8x16xf32>
    %6 = math.exp %5 : vector<8x16xf32>
    %c0_4 = arith.constant 0 : index
    %c0_5 = arith.constant 0 : index
    %7 = vector.load %arg6[%c0_4, %c0_5] : memref<8x1xf32, #tpu.memory_space<vmem>>, vector<8x1xf32>
    %cst_6 = arith.constant dense<0.000000e+00> : vector<8xf32>
    %8 = vector.multi_reduction <add>, %6, %cst_6 [1] : vector<8x16xf32> to vector<8xf32>
    %9 = vector.shape_cast %8 : vector<8xf32> to vector<8x1xf32>
    %10 = arith.addf %7, %9 : vector<8x1xf32>
    %c0_7 = arith.constant 0 : index
    %c0_8 = arith.constant 0 : index
    %11 = vector.load %arg6[%c0_7, %c0_8] : memref<8x1xf32, #tpu.memory_space<vmem>>, vector<8x1xf32>
    tpu.vector_store %arg6[%c0_7, %c0_8], %10 {strides = array<i32>} : memref<8x1xf32, #tpu.memory_space<vmem>>, vector<8x1xf32>,
    %c8_i32 = arith.constant 8 : i32
    %12 = arith.muli %arg0, %c8_i32 : i32
    %c16_i32 = arith.constant 16 : i32
    %13 = arith.muli %arg1, %c16_i32 : i32
    %c16_i32_9 = arith.constant 16 : i32
    %14 = arith.addi %13, %c16_i32_9 : i32
    %15 = arith.cmpi slt, %12, %14 : i32
    %c8_i32_10 = arith.constant 8 : i32
    %16 = arith.addi %12, %c8_i32_10 : i32
    %17 = arith.cmpi slt, %13, %16 : i32
    %18 = arith.andi %15, %17 : i1
    %19 = arith.extui %18 : i1 to i32
    %c0_i32_11 = arith.constant 0 : i32
    %20 = arith.cmpi ne, %19, %c0_i32_11 : i32
    scf.if %20 {
      %24 = tpu.iota {dimensions = array<i32: 0>} : vector<8x16xi32>
      %25 = vector.broadcast %12 : i32 to vector<8x16xi32>
      %26 = arith.addi %25, %24 : vector<8x16xi32>
      %27 = tpu.iota {dimensions = array<i32: 1>} : vector<8x16xi32>
      %28 = vector.broadcast %13 : i32 to vector<8x16xi32>
      %29 = arith.addi %28, %27 : vector<8x16xi32>
      %30 = arith.cmpi eq, %26, %29 : vector<8x16xi32>
      %cst_14 = arith.constant 0.000000e+00 : f32
      %31 = vector.broadcast %cst_14 : f32 to vector<8x16xf32>
      %32 = arith.select %30, %6, %31 : vector<8x16xi1>, vector<8x16xf32>
      %c0_15 = arith.constant 0 : index
      %c0_16 = arith.constant 0 : index
      %33 = vector.load %arg6[%c0_15, %c0_16] : memref<8x1xf32, #tpu.memory_space<vmem>>, vector<8x1xf32>
      %cst_17 = arith.constant dense<0.000000e+00> : vector<8xf32>
      %34 = vector.multi_reduction <add>, %32, %cst_17 [1] : vector<8x16xf32> to vector<8xf32>
      %35 = vector.shape_cast %34 : vector<8xf32> to vector<8x1xf32>
      %36 = arith.subf %33, %35 : vector<8x1xf32>
      %c0_18 = arith.constant 0 : index
      %c0_19 = arith.constant 0 : index
      %37 = vector.load %arg6[%c0_18, %c0_19] : memref<8x1xf32, #tpu.memory_space<vmem>>, vector<8x1xf32>
      tpu.vector_store %arg6[%c0_18, %c0_19], %36 {strides = array<i32>} : memref<8x1xf32, #tpu.memory_space<vmem>>, vector<8x1xf32>,
    } else {
    }
    %c0_i32_12 = arith.constant 0 : i32
    %21 = arith.cmpi eq, %arg1, %c0_i32_12 : i32
    %22 = arith.extui %21 : i1 to i32
    %c0_i32_13 = arith.constant 0 : i32
    %23 = arith.cmpi ne, %22, %c0_i32_13 : i32
    scf.if %23 {
      %c0_14 = arith.constant 0 : index
      %c0_15 = arith.constant 0 : index
      %24 = vector.load %arg6[%c0_14, %c0_15] : memref<8x1xf32, #tpu.memory_space<vmem>>, vector<8x1xf32>
      %cst_16 = arith.constant dense<0.000000e+00> : vector<8xf32>
      %25 = vector.multi_reduction <add>, %24, %cst_16 [1] : vector<8x1xf32> to vector<8xf32>
      %26 = vector.shape_cast %25 : vector<8xf32> to vector<8x1xf32>
      %c0_17 = arith.constant 0 : index
      %c0_18 = arith.constant 0 : index
      %27 = vector.load %arg2[%c0_17, %c0_18] : memref<8x32xf32, #tpu.memory_space<vmem>>, vector<8x32xf32>
      %c0_19 = arith.constant 0 : index
      %c0_20 = arith.constant 0 : index
      %28 = vector.load %arg4[%c0_19, %c0_20] : memref<8x32xf32, #tpu.memory_space<vmem>>, vector<8x32xf32>
      %29 = arith.mulf %27, %28 : vector<8x32xf32>
      %cst_21 = arith.constant dense<0.000000e+00> : vector<8xf32>
      %30 = vector.multi_reduction <add>, %29, %cst_21 [1] : vector<8x32xf32> to vector<8xf32>
      %31 = vector.shape_cast %30 : vector<8xf32> to vector<8x1xf32>
      %cst_22 = arith.constant 0.000000e+00 : f32
      %32 = vector.broadcast %cst_22 : f32 to vector<8x1xf32>
      %33 = arith.subf %32, %31 : vector<8x1xf32>
      %cst_23 = arith.constant 2.000000e-01 : f32
      %34 = vector.broadcast %cst_23 : f32 to vector<8x1xf32>
      %35 = arith.subf %31, %34 : vector<8x1xf32>
      %36 = math.exp %35 : vector<8x1xf32>
      %37 = arith.addf %36, %26 : vector<8x1xf32>
      %38 = math.log %37 : vector<8x1xf32>
      %39 = arith.addf %33, %38 : vector<8x1xf32>
      %c0_24 = arith.constant 0 : index
      %c0_25 = arith.constant 0 : index
      %40 = vector.load %arg5[%c0_24, %c0_25] : memref<8x1xf32, #tpu.memory_space<vmem>>, vector<8x1xf32>
      tpu.vector_store %arg5[%c0_24, %c0_25], %39 {strides = array<i32>} : memref<8x1xf32, #tpu.memory_space<vmem>>, vector<8x1xf32>,
    } else {
    }
    return
  }
  func.func @transform_0(%arg0: i32, %arg1: i32) -> (i32, i32) {
    %c0_i32 = arith.constant 0 : i32
    %c0_i32_0 = arith.constant 0 : i32
    return %arg0, %c0_i32 : i32, i32
  }
  func.func @transform_1(%arg0: i32, %arg1: i32) -> (i32, i32) {
    %c0_i32 = arith.constant 0 : i32
    %c0_i32_0 = arith.constant 0 : i32
    return %arg1, %c0_i32 : i32, i32
  }
  func.func @transform_2(%arg0: i32, %arg1: i32) -> (i32, i32) {
    %c1_i32 = arith.constant 1 : i32
    %0 = arith.addi %arg0, %c1_i32 : i32
    %c2_i32 = arith.constant 2 : i32
    %c0_i32 = arith.constant 0 : i32
    %1 = arith.cmpi eq, %c2_i32, %c0_i32 : i32
    %c1_i32_0 = arith.constant 1 : i32
    %2 = arith.select %1, %c1_i32_0, %c2_i32 : i32
    %3 = arith.remsi %0, %2 : i32
    %c0_i32_1 = arith.constant 0 : i32
    %4 = arith.cmpi ne, %3, %c0_i32_1 : i32
    %c0_i32_2 = arith.constant 0 : i32
    %5 = arith.cmpi slt, %3, %c0_i32_2 : i32
    %c0_i32_3 = arith.constant 0 : i32
    %6 = arith.cmpi slt, %2, %c0_i32_3 : i32
    %7 = arith.xori %5, %6 : i1
    %8 = arith.andi %7, %4 : i1
    %9 = arith.addi %3, %2 : i32
    %10 = arith.select %8, %9, %3 : i32
    %c0_i32_4 = arith.constant 0 : i32
    %c0_i32_5 = arith.constant 0 : i32
    return %10, %c0_i32_4 : i32, i32
  }
  func.func @transform_3(%arg0: i32, %arg1: i32) -> (i32, i32) {
    %c0_i32 = arith.constant 0 : i32
    %c0_i32_0 = arith.constant 0 : i32
    return %arg0, %c0_i32 : i32, i32
  }
}

</mosaic_0001>

<llo_original>
// kernel: tpu_custom_call.1
$region0: #{tpu_custom_call.1}
  #allocation0 [shape = 'u32[]', space=smem, size = 0x4, offset = 0x4, fixed_abs, tag = 'smem constant byte address 0x4 - core index']
  #allocation1 [shape = 'u32[144,128]{1,0:T(1,128)}', space=vmem, size = 0x12000, scoped, tag = 'internal scratch']
  #allocation2 [shape = 'f32[8,1]{1,0:T(8,128)}', space=vmem, size = 0x1000, scoped, tag = 'scratch operand']
  %s0 = inlined_call_operand.hbm [shape: f32[16,32], index: 0, kind: input, shape index: {}]
  %s1 = inlined_call_operand.hbm [shape: f32[16,32], index: 1, kind: input, shape index: {}]
  %s2 = inlined_call_operand.hbm [shape: f32[16,32], index: 2, kind: input, shape index: {}]
  %s3 = inlined_call_operand.vmem [shape: f32[16,1], index: 3, kind: output, shape index: {}]
  %s4 = sld [smem:[#allocation0]]
  $region69: #{tpu_custom_call.1} parent=0
    _
  %s6 = ssub.s32 1, %s4
  %s7 = scalar_select 0, %s6, %s4
  $region1: #{tpu_custom_call.1} parent=0
    #allocation3 [shape = 'u8[8192]{0}', space=vmem, size = 0x2000, scoped, tag = 'input window, operand 0']
    #allocation4 [shape = 's32[2]{0}', space=sflag, size = 0x8, scoped, tag = 'scoped memory for tpu_custom_call.1']
    #allocation5 [shape = 'u8[8192]{0}', space=vmem, size = 0x2000, scoped, tag = 'input window, operand 1, single buffered']
    #allocation6 [shape = 's32[1]{0}', space=sflag, size = 0x4, scoped, tag = 'scoped memory for tpu_custom_call.1']
    #allocation7 [shape = 'u8[8192]{0}', space=vmem, size = 0x2000, scoped, tag = 'input window, operand 2']
    %8 = vsyncpa [#allocation4], 0
    %s9 = scalar_lea.sflag [#allocation4], 1
    %10 = vsyncpa %s9, 0
    %11 = vsyncpa [#allocation6], 0
    loop: start=0, step=1, limit=4
    $region2: #{tpu_custom_call.1} parent=1 // loop_pre_header
      _
    $region3: #{tpu_custom_call.1} parent=1 // loop_header
      %s13 = sphi 0, %s17
      %p14 = scmp.ge.s32.totalorder %s13, 4
      %s20 = sphi 0, %s32
      %s21 = sphi 0, %s28
      %s22 = sphi 0, %s20
      %s23 = sphi 0, %s21
      %s24 = sphi 0, %s22
      %s25 = sphi 0, %s23
      %s35 = sphi 0, %s37
      %s38 = sphi 0, %s35
      %s39 = sphi 0, %s38
      %s55 = sphi 0, %s39
      %s61 = sphi 0, %s63
      %s64 = sphi 0, %s61
      %s65 = sphi 0, %s64
      %s81 = sphi 0, %s65
      %s113 = sphi 0, %s115
      %s116 = sphi 0, %s113
      %s117 = sphi 0, %s116
      %s133 = sphi 0, %s117
      %s139 = sphi 0, %s141
      %s142 = sphi 0, %s139
      %s143 = sphi 0, %s142
      %s159 = sphi 0, %s143
    $region4: #{tpu_custom_call.1} parent=1 // loop_header_branch
      %16 = sbr.rel (%p14) target = $region8
    $region5: #{tpu_custom_call.1} parent=1 // loop_body
      %s18 = ssub.s32 %s13, 1
      %s19 = ssub.s32 %s13, 2
      %s26 = sadd.s32 1, %s21
      %p27 = scmp.ge.s32.totalorder %s26, 1
      %s28 = scalar_select %p27, 0, %s26
      %s29 = sadd.s32 1, %s20
      %s30 = scalar_select %p27, %s29, %s20
      %p31 = scmp.ge.s32.totalorder %s30, 2
      %s32 = scalar_select %p31, 0, %s30
      %s33 = ssub.s32 %s20, %s32
      %p34 = scmp.eq.s32.totalorder %s33, 0
      %s36 = sadd.s32 %s35, 1
      %s37 = scalar_select %p34, %s35, %s36
      %p40 = pneg %p34
      %p41 = scmp.eq.s32.totalorder %s13, 1
      %p42 = por %p40, %p41
      %p43 = scmp.ne.s32.totalorder %s35, %s38
      %p44 = scmp.eq.s32.totalorder %s13, 0
      %p45 = por %p43, %p44
      %p46 = scmp.ne.s32.totalorder %s35, %s38
      %p47 = scmp.eq.s32.totalorder %s18, 1
      %p48 = por %p46, %p47
      %p49 = scmp.ne.s32.totalorder %s38, %s39
      %p50 = scmp.eq.s32.totalorder %s18, 0
      %p51 = por %p49, %p50
      %p52 = scmp.ne.s32.totalorder %s38, %s39
      %p53 = scmp.eq.s32.totalorder %s19, 1
      %p54 = por %p52, %p53
      %p56 = scmp.ne.s32.totalorder %s39, %s55
      %p57 = scmp.eq.s32.totalorder %s19, 0
      %p58 = por %p56, %p57
      %s59 = ssub.s32 %s21, %s28
      %p60 = scmp.eq.s32.totalorder %s59, 0
      %s62 = sadd.s32 %s61, 1
      %s63 = scalar_select %p60, %s61, %s62
      %p66 = pneg %p60
      %p67 = scmp.eq.s32.totalorder %s13, 1
      %p68 = por %p66, %p67
      %p69 = scmp.ne.s32.totalorder %s61, %s64
      %p70 = scmp.eq.s32.totalorder %s13, 0
      %p71 = por %p69, %p70
      %p72 = scmp.ne.s32.totalorder %s61, %s64
      %p73 = scmp.eq.s32.totalorder %s18, 1
      %p74 = por %p72, %p73
      %p75 = scmp.ne.s32.totalorder %s64, %s65
      %p76 = scmp.eq.s32.totalorder %s18, 0
      %p77 = por %p75, %p76
      %p78 = scmp.ne.s32.totalorder %s64, %s65
      %p79 = scmp.eq.s32.totalorder %s19, 1
      %p80 = por %p78, %p79
      %p82 = scmp.ne.s32.totalorder %s65, %s81
      %p83 = scmp.eq.s32.totalorder %s19, 0
      %p84 = por %p82, %p83
      %s85 = sadd.s32 %s20, 1
      %p86 = scmp.lt.s32.totalorder %s85, 0
      %s87 = ssub.s32 0, %s85
      %s88 = scalar_select %p86, %s87, %s85
      %s89 = sand.u32 %s88, 1
      %s90 = ssub.s32 0, %s89
      %s91 = scalar_select %p86, %s90, %s89
      %p92 = scmp.ne.s32.totalorder %s91, 0
      %p93 = scmp.lt.s32.totalorder %s91, 0
      %p94 = pnand %p93, %p92
      %p95 = pneg %p94
      %s96 = sadd.s32 %s91, 2
      %s97 = scalar_select %p95, %s96, %s91
      %s98 = sadd.s32 %s32, 1
      %p99 = scmp.lt.s32.totalorder %s98, 0
      %s100 = ssub.s32 0, %s98
      %s101 = scalar_select %p99, %s100, %s98
      %s102 = sand.u32 %s101, 1
      %s103 = ssub.s32 0, %s102
      %s104 = scalar_select %p99, %s103, %s102
      %p105 = scmp.ne.s32.totalorder %s104, 0
      %p106 = scmp.lt.s32.totalorder %s104, 0
      %p107 = pnand %p106, %p105
      %p108 = pneg %p107
      %s109 = sadd.s32 %s104, 2
      %s110 = scalar_select %p108, %s109, %s104
      %s111 = ssub.s32 %s97, %s110
      %p112 = scmp.eq.s32.totalorder %s111, 0
      %s114 = sadd.s32 %s113, 1
      %s115 = scalar_select %p112, %s113, %s114
      %p118 = pneg %p112
      %p119 = scmp.eq.s32.totalorder %s13, 1
      %p120 = por %p118, %p119
      %p121 = scmp.ne.s32.totalorder %s113, %s116
      %p122 = scmp.eq.s32.totalorder %s13, 0
      %p123 = por %p121, %p122
      %p124 = scmp.ne.s32.totalorder %s113, %s116
      %p125 = scmp.eq.s32.totalorder %s18, 1
      %p126 = por %p124, %p125
      %p127 = scmp.ne.s32.totalorder %s116, %s117
      %p128 = scmp.eq.s32.totalorder %s18, 0
      %p129 = por %p127, %p128
      %p130 = scmp.ne.s32.totalorder %s116, %s117
      %p131 = scmp.eq.s32.totalorder %s19, 1
      %p132 = por %p130, %p131
      %p134 = scmp.ne.s32.totalorder %s117, %s133
      %p135 = scmp.eq.s32.totalorder %s19, 0
      %p136 = por %p134, %p135
      %s137 = ssub.s32 %s20, %s32
      %p138 = scmp.eq.s32.totalorder %s137, 0
      %s140 = sadd.s32 %s139, 1
      %s141 = scalar_select %p138, %s139, %s140
      %p144 = pneg %p138
      %p145 = scmp.eq.s32.totalorder %s13, 1
      %p146 = por %p144, %p145
      %p147 = scmp.ne.s32.totalorder %s139, %s142
      %p148 = scmp.eq.s32.totalorder %s13, 0
      %p149 = por %p147, %p148
      %p150 = scmp.ne.s32.totalorder %s139, %s142
      %p151 = scmp.eq.s32.totalorder %s18, 1
      %p152 = por %p150, %p151
      %p153 = scmp.ne.s32.totalorder %s142, %s143
      %p154 = scmp.eq.s32.totalorder %s18, 0
      %p155 = por %p153, %p154
      %p156 = scmp.ne.s32.totalorder %s142, %s143
      %p157 = scmp.eq.s32.totalorder %s19, 1
      %p158 = por %p156, %p157
      %p160 = scmp.ne.s32.totalorder %s143, %s159
      %p161 = scmp.eq.s32.totalorder %s19, 0
      %p162 = por %p160, %p161
      %p163 = scmp.le.s32.totalorder 1, %s13
      %p164 = scmp.lt.s32.totalorder %s13, 3
      %p165 = pnand %p163, %p164
      %p166 = pneg %p165
      // Predicated region
      $region9: #{tpu_custom_call.1} parent=5 // pred_check
        _
      $region10: #{tpu_custom_call.1} parent=5 // pred_check_branch
        %168 = sbr.rel (%p165) target = $region12
      $region11: #{tpu_custom_call.1} parent=5 // pred_region
        %s169 = ssub.s32 %s13, 1
        // Predicated region
        $region13: #{tpu_custom_call.1} parent=11 // pred_check
          %p170 = pneg %p77
        $region14: #{tpu_custom_call.1} parent=11 // pred_check_branch
          %172 = sbr.rel (%p170) target = $region16
        $region15: #{tpu_custom_call.1} parent=11 // pred_region
          %s173 = smul.u32 2, %s23
          %s175 = ssub.s32 256, 256
          %176 = vsyncadd [#allocation6], %s175
          %s177 = smul.addr %s173, 128
          %s178 = scalar_lea.hbm %s1, %s177
          %s179 = sshll.u32 [#allocation5], 4
          %s180 = int_to_ptr.vmem [resolvable:$true] %s179
          %185 = dma.hbm_to_vmem [thread:$0]  %s178, 256, %s180, [#allocation6], 128, 128, 8
        $region16: #{tpu_custom_call.1} parent=11 // pred_fallthru
          _
      $region12: #{tpu_custom_call.1} parent=5 // pred_fallthru
        _
      %p186 = scmp.lt.s32.totalorder %s13, 2
      // Predicated region
      $region17: #{tpu_custom_call.1} parent=5 // pred_check
        %p187 = pneg %p186
      $region18: #{tpu_custom_call.1} parent=5 // pred_check_branch
        %189 = sbr.rel (%p187) target = $region20
      $region19: #{tpu_custom_call.1} parent=5 // pred_region
        // Predicated region
        $region21: #{tpu_custom_call.1} parent=19 // pred_check
          %p190 = pneg %p45
        $region22: #{tpu_custom_call.1} parent=19 // pred_check_branch
          %192 = sbr.rel (%p190) target = $region24
        $region23: #{tpu_custom_call.1} parent=19 // pred_region
          %s193 = sand.u32 %s13, 1
          %s194 = scalar_lea.sflag [#allocation4], %s193
          %s195 = sand.u32 %s35, 1
          %s196 = smul.addr %s195, 8
          %s197 = scalar_lea.vmem [#allocation3], %s196
          %s199 = ssub.s32 128, 128
          %200 = vsyncadd %s194, %s199
          %s201 = smul.addr %s20, 128
          %s202 = scalar_lea.hbm %s0, %s201
          %s204 = sshll.u32 %s197, 4
          %s205 = int_to_ptr.vmem [resolvable:$true] %s204
          %207 = dma.hbm_to_vmem [thread:$0]  %s202, 128, %s205, %s194
        $region24: #{tpu_custom_call.1} parent=19 // pred_fallthru
          _
        // Predicated region
        $region25: #{tpu_custom_call.1} parent=19 // pred_check
          %p208 = pneg %p123
        $region26: #{tpu_custom_call.1} parent=19 // pred_check_branch
          %210 = sbr.rel (%p208) target = $region28
        $region27: #{tpu_custom_call.1} parent=19 // pred_region
          %s211 = sand.u32 %s13, 1
          %s212 = scalar_lea.sflag [#allocation4], %s211
          %s213 = sand.u32 %s113, 1
          %s214 = smul.addr %s213, 8
          %s215 = scalar_lea.vmem [#allocation7], %s214
          %s216 = sadd.s32 %s20, 1
          %p217 = scmp.lt.s32.totalorder %s216, 0
          %s218 = ssub.s32 0, %s216
          %s219 = scalar_select %p217, %s218, %s216
          %s220 = sand.u32 %s219, 1
          %s221 = ssub.s32 0, %s220
          %s222 = scalar_select %p217, %s221, %s220
          %p223 = scmp.ne.s32.totalorder %s222, 0
          %p224 = scmp.lt.s32.totalorder %s222, 0
          %p225 = pnand %p224, %p223
          %p226 = pneg %p225
          %s227 = sadd.s32 %s222, 2
          %s228 = scalar_select %p226, %s227, %s222
          %s230 = ssub.s32 128, 128
          %231 = vsyncadd %s212, %s230
          %s232 = smul.addr %s228, 128
          %s233 = scalar_lea.hbm %s2, %s232
          %s235 = sshll.u32 %s215, 4
          %s236 = int_to_ptr.vmem [resolvable:$true] %s235
          %238 = dma.hbm_to_vmem [thread:$0]  %s233, 128, %s236, %s212
        $region28: #{tpu_custom_call.1} parent=19 // pred_fallthru
          _
      $region20: #{tpu_custom_call.1} parent=5 // pred_fallthru
        _
      %p239 = scmp.le.s32.totalorder 1, %s13
      %p240 = scmp.lt.s32.totalorder %s13, 3
      %p241 = pnand %p239, %p240
      %p242 = pneg %p241
      // Predicated region
      $region29: #{tpu_custom_call.1} parent=5 // pred_check
        _
      $region30: #{tpu_custom_call.1} parent=5 // pred_check_branch
        %244 = sbr.rel (%p241) target = $region32
      $region31: #{tpu_custom_call.1} parent=5 // pred_region
        %s245 = ssub.s32 %s13, 1
        %s246 = sand.u32 %s18, 1
        %s247 = scalar_lea.sflag [#allocation4], %s246
        %s248 = sand.u32 %s38, 1
        %s249 = smul.addr %s248, 8
        %s250 = scalar_lea.vmem [#allocation3], %s249
        // Predicated region
        $region33: #{tpu_custom_call.1} parent=31 // pred_check
          %p251 = pneg %p51
        $region34: #{tpu_custom_call.1} parent=31 // pred_check_branch
          %253 = sbr.rel (%p251) target = $region36
        $region35: #{tpu_custom_call.1} parent=31 // pred_region
          %254 = dma.done %s247, 128
        $region36: #{tpu_custom_call.1} parent=31 // pred_fallthru
          _
        // Predicated region
        $region37: #{tpu_custom_call.1} parent=31 // pred_check
          %p255 = pneg %p77
        $region38: #{tpu_custom_call.1} parent=31 // pred_check_branch
          %257 = sbr.rel (%p255) target = $region40
        $region39: #{tpu_custom_call.1} parent=31 // pred_region
          %258 = dma.done [#allocation6], 256
        $region40: #{tpu_custom_call.1} parent=31 // pred_fallthru
          _
        %s259 = sand.u32 %s18, 1
        %s260 = scalar_lea.sflag [#allocation4], %s259
        %s261 = sand.u32 %s116, 1
        %s262 = smul.addr %s261, 8
        %s263 = scalar_lea.vmem [#allocation7], %s262
        // Predicated region
        $region41: #{tpu_custom_call.1} parent=31 // pred_check
          %p264 = pneg %p129
        $region42: #{tpu_custom_call.1} parent=31 // pred_check_branch
          %266 = sbr.rel (%p264) target = $region44
        $region43: #{tpu_custom_call.1} parent=31 // pred_region
          %267 = dma.done %s260, 128
        $region44: #{tpu_custom_call.1} parent=31 // pred_fallthru
          _
        %s268 = sand.u32 %s18, 1
        %s269 = scalar_lea.sflag [#allocation4], %s268
        %s270 = sand.u32 %s38, 1
        %s271 = smul.addr %s270, 8
        %s272 = scalar_lea.vmem [#allocation3], %s271
        %p273 = pneg %p51
        %p274 = pneg %p48
        %p275 = pneg %p77
        %p276 = pneg %p74
        %s277 = sand.u32 %s18, 1
        %s278 = scalar_lea.sflag [#allocation4], %s277
        %s279 = sand.u32 %s116, 1
        %s280 = smul.addr %s279, 8
        %s281 = scalar_lea.vmem [#allocation7], %s280
        %p282 = pneg %p129
        %p283 = pneg %p126
        %p284 = pneg %p155
        %p285 = pneg %p152
        %p286 = scmp.lt.s32.totalorder %s22, 1
        %s287 = scalar_select %p286, %s22, 1
        %s288 = smul.addr %s287, 8
        %s289 = scalar_lea.vmem %s3, %s288
        %s290 = smul.u32 2, %s23
        %s291 = sadd.s32 %s22, 1
        %p292 = scmp.lt.s32.totalorder %s291, 0
        %s293 = ssub.s32 0, %s291
        %s294 = scalar_select %p292, %s293, %s291
        %s295 = sand.u32 %s294, 1
        %s296 = ssub.s32 0, %s295
        %s297 = scalar_select %p292, %s296, %s295
        %p298 = scmp.ne.s32.totalorder %s297, 0
        %p299 = scmp.lt.s32.totalorder %s297, 0
        %p300 = pnand %p299, %p298
        %p301 = pneg %p300
        %s302 = sadd.s32 %s297, 2
        %s303 = scalar_select %p301, %s302, %s297
        %p304 = scmp.lt.s32.totalorder %s22, 1
        %s305 = scalar_select %p304, %s22, 1
        %s306 = smul.addr %s305, 8
        %s307 = scalar_lea.vmem %s3, %s306
        %p308 = scmp.eq.s32.totalorder %s23, 0
        // Predicated region
        $region45: #{tpu_custom_call.1} parent=31 // pred_check
          %p309 = pneg %p308
        $region46: #{tpu_custom_call.1} parent=31 // pred_check_branch
          %311 = sbr.rel (%p309) target = $region48
        $region47: #{tpu_custom_call.1} parent=31 // pred_region
          %vm312 = vcmask 7168
          %313 = vst.msk [vmem:[#allocation2] sm:$0xff] %vm312, 0.0
        $region48: #{tpu_custom_call.1} parent=31 // pred_fallthru
          _
        %v314 = vld [vmem:[%s250] sm:$0xff]
        %v315 = vld [vmem:[#allocation5] sm:$0xff]
        %v316 = vld [vmem:[#allocation5 + $0x8] sm:$0xff]
        %vm317 = vcmask 261120
        %v319 = vsel %vm317, %v314, 0
        %v322 = vsel %vm317, %v315, 0
        %v325 = vsel %vm317, %v316, 0
        %327 = vmatprep.subr.mxu0 0.0
        %328 = vmatpush1.xpose.msra.mxu0 0.0
        %329 = vmatprep.subr.mxu0 0.0
        %330 = vmatpush1.xpose.msra.mxu0 0.0
        %331 = vmatprep.subr.mxu0 0.0
        %332 = vmatpush1.xpose.msra.mxu0 0.0
        %333 = vmatprep.subr.mxu0 0.0
        %334 = vmatpush1.xpose.msra.mxu0 0.0
        %335 = vmatprep.subr.mxu0 0.0
        %336 = vmatpush1.xpose.msra.mxu0 0.0
        %337 = vmatprep.subr.mxu0 0.0
        %338 = vmatpush1.xpose.msra.mxu0 0.0
        %339 = vmatprep.subr.mxu0 0.0
        %340 = vmatpush1.xpose.msra.mxu0 0.0
        %341 = vmatprep.subr.mxu0 0.0
        %342 = vmatpush1.xpose.msra.mxu0 0.0
        %343 = vmatprep.subr.mxu0 0.0
        %344 = vmatpush1.xpose.msra.mxu0 0.0
        %345 = vmatprep.subr.mxu0 0.0
        %346 = vmatpush1.xpose.msra.mxu0 0.0
        %347 = vmatprep.subr.mxu0 0.0
        %348 = vmatpush1.xpose.msra.mxu0 0.0
        %349 = vmatprep.subr.mxu0 0.0
        %350 = vmatpush1.xpose.msra.mxu0 0.0
        %351 = vmatprep.subr.mxu0 0.0
        %352 = vmatpush1.xpose.msra.mxu0 0.0
        %353 = vmatprep.subr.mxu0 0.0
        %354 = vmatpush1.xpose.msra.mxu0 0.0
        %355 = vmatprep.subr.mxu0 0.0
        %356 = vmatpush1.xpose.msra.mxu0 %v325
        %357 = vmatprep.subr.mxu0 0.0
        %358 = vmatpush1.xpose.msra.mxu0 %v322
        %359 = vmatprep.subr.mxu0 0.0
        %360 = vmatpush2.xpose.msra.mxu0 0.0
        %361 = vmatprep.subr.mxu0 0.0
        %362 = vmatpush2.xpose.msra.mxu0 0.0
        %363 = vmatprep.subr.mxu0 0.0
        %364 = vmatpush2.xpose.msra.mxu0 0.0
        %365 = vmatprep.subr.mxu0 0.0
        %366 = vmatpush2.xpose.msra.mxu0 0.0
        %367 = vmatprep.subr.mxu0 0.0
        %368 = vmatpush2.xpose.msra.mxu0 0.0
        %369 = vmatprep.subr.mxu0 0.0
        %370 = vmatpush2.xpose.msra.mxu0 0.0
        %371 = vmatprep.subr.mxu0 0.0
        %372 = vmatpush2.xpose.msra.mxu0 0.0
        %373 = vmatprep.subr.mxu0 0.0
        %374 = vmatpush2.xpose.msra.mxu0 0.0
        %375 = vmatprep.subr.mxu0 0.0
        %376 = vmatpush2.xpose.msra.mxu0 0.0
        %377 = vmatprep.subr.mxu0 0.0
        %378 = vmatpush2.xpose.msra.mxu0 0.0
        %379 = vmatprep.subr.mxu0 0.0
        %380 = vmatpush2.xpose.msra.mxu0 0.0
        %381 = vmatprep.subr.mxu0 0.0
        %382 = vmatpush2.xpose.msra.mxu0 0.0
        %383 = vmatprep.subr.mxu0 0.0
        %384 = vmatpush2.xpose.msra.mxu0 0.0
        %385 = vmatprep.subr.mxu0 0.0
        %386 = vmatpush2.xpose.msra.mxu0 0.0
        %387 = vmatprep.subr.mxu0 0.0
        %388 = vmatpush2.xpose.msra.mxu0 0.0
        %389 = vmatprep.subr.mxu0 0.0
        %390 = vmatpush2.xpose.msra.mxu0 0.0
        %391 = vmatprep.mubr.f32.mxu0 0.0
        %392 = vmatmul.mubr.f32.gmra.mxu0 %v319
        %v393 = vpop.f32.mrf.mxu0
        %v394 = vadd.f32 0.0, %v393
        %v395 = vpop.f32.mrf.mxu0
        %396 = vdwg.mxu0
        %v397 = vmul.f32 %v394, 1.442695
        %v398 = vpow.pop %v397
        %v399 = vld [vmem:[#allocation2] sm:$0xff]
        %vm400 = vcmask 130048
        %v401 = vsel %vm400, %v398, 0.0
        %402 = vadd.xlane.f32.xlu0 %v401
        %v403 = vpop.xlane.xlu0 %402
        %v404 = vadd.f32 %v399, %v403
        %vm405 = vcmask 7168
        %406 = vst.msk [vmem:[#allocation2] sm:$0xff] %vm405, %v404
        %s407 = smul.u32 %s22, 8
        %s408 = smul.u32 %s23, 16
        %s409 = sadd.s32 %s408, 16
        %p410 = scmp.lt.s32.totalorder %s407, %s409
        %s411 = sadd.s32 %s407, 8
        %p412 = scmp.lt.s32.totalorder %s408, %s411
        %p413 = pnand %p410, %p412
        %p414 = pneg %p413
        // Predicated region
        $region49: #{tpu_custom_call.1} parent=31 // pred_check
          _
        $region50: #{tpu_custom_call.1} parent=31 // pred_check_branch
          %416 = sbr.rel (%p413) target = $region52
        $region51: #{tpu_custom_call.1} parent=31 // pred_region
          %v417 = vlaneseq
          %v418 = vshrl.u32 %v417, 7
          %v419 = vstv %s407
          %v420 = vadd.s32 %v419, %v418
          %v421 = vlaneseq
          %v422 = vand.u32 %v421, 127
          %v423 = vstv %s408
          %v424 = vadd.s32 %v423, %v422
          %vm425 = vcmp.eq.s32.totalorder %v420, %v424
          %v426 = vsel %vm425, %v398, 0.0
          %v427 = vld [vmem:[#allocation2] sm:$0xff]
          %v428 = vsel %vm400, %v426, 0.0
          %429 = vadd.xlane.f32.xlu0 %v428
          %v430 = vpop.xlane.xlu0 %429
          %v431 = vsub.f32 %v427, %v430
          %432 = vst.msk [vmem:[#allocation2] sm:$0xff] %vm405, %v431
        $region52: #{tpu_custom_call.1} parent=31 // pred_fallthru
          _
        // Predicated region
        $region53: #{tpu_custom_call.1} parent=31 // pred_check
          %p433 = pneg %p308
        $region54: #{tpu_custom_call.1} parent=31 // pred_check_branch
          %435 = sbr.rel (%p433) target = $region56
        $region55: #{tpu_custom_call.1} parent=31 // pred_region
          %v436 = vld [vmem:[#allocation2] sm:$0xff]
          %v437 = vadd.f32 %v436, 0.0
          %v438 = vld [vmem:[%s250] sm:$0xff]
          %v439 = vld [vmem:[%s263] sm:$0xff]
          %v440 = vmul.f32 %v438, %v439
          %v441 = vsel %vm317, %v440, 0.0
          %442 = vadd.xlane.f32.xlu0 %v441
          %v443 = vpop.xlane.xlu0 %442
          %v444 = vsub.f32 0.0, %v443
          %v445 = vsub.f32 %v443, 0.2
          %v446 = vmul.f32 %v445, 1.442695
          %v447 = vpow.pop %v446
          %v448 = vadd.f32 %v447, %v437
          %v449 = vlog2.pop %v448
          %v450 = vmul.f32 %v449, 0.6931472
          %v451 = vadd.f32 %v444, %v450
          %452 = vst.msk [vmem:[%s307] sm:$0xff] %vm405, %v451
        $region56: #{tpu_custom_call.1} parent=31 // pred_fallthru
          _
        %p453 = scmp.lt.s32.totalorder %s22, 1
        %s454 = scalar_select %p453, %s22, 1
        %s455 = smul.addr %s454, 8
        %s456 = scalar_lea.vmem %s3, %s455
        // Predicated region
        $region57: #{tpu_custom_call.1} parent=31 // pred_check
          %p457 = pneg %p152
        $region58: #{tpu_custom_call.1} parent=31 // pred_check_branch
          %459 = sbr.rel (%p457) target = $region60
        $region59: #{tpu_custom_call.1} parent=31 // pred_region
          _
        $region60: #{tpu_custom_call.1} parent=31 // pred_fallthru
          _
      $region32: #{tpu_custom_call.1} parent=5 // pred_fallthru
        _
      %p460 = scmp.le.s32.totalorder 2, %s13
      // Predicated region
      $region61: #{tpu_custom_call.1} parent=5 // pred_check
        %p461 = pneg %p460
      $region62: #{tpu_custom_call.1} parent=5 // pred_check_branch
        %463 = sbr.rel (%p461) target = $region64
      $region63: #{tpu_custom_call.1} parent=5 // pred_region
        %s464 = ssub.s32 %s13, 2
        // Predicated region
        $region65: #{tpu_custom_call.1} parent=63 // pred_check
          %p465 = pneg %p158
        $region66: #{tpu_custom_call.1} parent=63 // pred_check_branch
          %467 = sbr.rel (%p465) target = $region68
        $region67: #{tpu_custom_call.1} parent=63 // pred_region
          %p468 = scmp.lt.s32.totalorder %s24, 1
          %s469 = scalar_select %p468, %s24, 1
          %s470 = smul.addr %s469, 8
          %s471 = scalar_lea.vmem %s3, %s470
        $region68: #{tpu_custom_call.1} parent=63 // pred_fallthru
          _
      $region64: #{tpu_custom_call.1} parent=5 // pred_fallthru
        _
    $region6: #{tpu_custom_call.1} parent=1 // loop_footer
      %s17 = sadd.s32 1, %s13
    $region7: #{tpu_custom_call.1} parent=1 // loop_footer_branch
      %12 = sbr.rel target = $region3
    $region8: #{tpu_custom_call.1} parent=1 // loop_exit
      _
    %472 = vsyncpa [#allocation4], 1
    %s473 = scalar_lea.sflag [#allocation4], 1
    %474 = vsyncpa %s473, 1
    %475 = vsyncpa [#allocation6], 1

</llo_original>
